<compile_context>
chip_gen: v5e
topology: v5e:2x2
jax: 0.10.0
libtpu: 0.0.40
codegen_flags: <defaults>
</compile_context>

<pallas_src>
import functools
import math

import jax
import jax.numpy as jnp
from jax import lax
from jax.experimental import pallas as pl
from jax.experimental.pallas import tpu as pltpu

_EPS = 1e-5                              # LayerNorm eps (hard-coded in the torch module)
_GELU_C = math.sqrt(2.0 / math.pi)       # tanh-GELU constant, computed once on host
_VMEM_LIMIT = 48 * 1024 * 1024           # explicit scoped-VMEM budget (fits v5e/v6e/v7x)


def _spec(block_shape, index_map, *, buffers=None):
    """BlockSpec helper; buffers=1 keeps a constant block single-buffered in VMEM."""
    if buffers is not None:
        try:
            return pl.BlockSpec(block_shape, index_map,
                                pipeline_mode=pl.Buffered(buffers))
        except (TypeError, AttributeError):
            pass  # older jax: fall back to default double-buffering
    return pl.BlockSpec(block_shape, index_map)


def _pick_tile(total, candidates):
    for c in candidates:
        if c <= total and total % c == 0:
            return c
    return total


# ---------------------------------------------------------------------------
# Kernel 1: LayerNorm1 + causal multi-head attention + out_proj + residual
# Grid: (batch,) — per grid step the whole (S, E) sequence for one batch row.
# ---------------------------------------------------------------------------
def _attn_block_kernel(x_ref, g1_ref, s1_ref, wq_ref, wk_ref, wv_ref,
                       wo_ref, bo_ref, o_ref, *, num_heads):
    x = x_ref[0]                                   # (S, E), native dtype
    xf = x.astype(jnp.float32)

    # LayerNorm (unbiased=False variance), computed in f32.
    mean = jnp.mean(xf, axis=-1, keepdims=True)
    var = jnp.mean((xf - mean) ** 2, axis=-1, keepdims=True)
    xn = (xf - mean) * lax.rsqrt(var + _EPS)
    xn = xn * g1_ref[...].astype(jnp.float32) + s1_ref[...].astype(jnp.float32)
    xn = xn.astype(x.dtype)                        # back to native dtype for MXU

    q = jnp.dot(xn, wq_ref[...], preferred_element_type=jnp.float32)
    k = jnp.dot(xn, wk_ref[...], preferred_element_type=jnp.float32)
    v = jnp.dot(xn, wv_ref[...], preferred_element_type=jnp.float32)

    S, E = q.shape
    hd = E // num_heads
    scale = 1.0 / math.sqrt(hd)

    row = lax.broadcasted_iota(jnp.int32, (S, S), 0)
    col = lax.broadcasted_iota(jnp.int32, (S, S), 1)
    causal = col <= row

    wo = wo_ref[...]
    # concat_h(ctx_h) @ Wo  ==  sum_h ctx_h @ Wo[h*hd:(h+1)*hd, :]; fold bias into init.
    acc = jnp.broadcast_to(bo_ref[...].astype(jnp.float32), (S, E))
    for h in range(num_heads):                     # static, small head loop
        sl = slice(h * hd, (h + 1) * hd)
        qh, kh, vh = q[:, sl], k[:, sl], v[:, sl]
        s = lax.dot_general(qh, kh, (((1,), (1,)), ((), ())),
                            preferred_element_type=jnp.float32) * scale
        s = jnp.where(causal, s, -jnp.inf)
        m = jnp.max(s, axis=-1, keepdims=True)
        p = jnp.exp(s - m)
        p = p / jnp.sum(p, axis=-1, keepdims=True)
        ctx_h = jnp.dot(p, vh, preferred_element_type=jnp.float32)
        acc = acc + jnp.dot(ctx_h.astype(wo.dtype), wo[sl, :],
                            preferred_element_type=jnp.float32)

    o_ref[0] = (acc + xf).astype(o_ref.dtype)      # residual add (pre-norm shortcut)


def attention_residual(x, g1, s1, wq, wk, wv, wo, bo, *, num_heads):
    B, S, E = x.shape
    kern = functools.partial(_attn_block_kernel, num_heads=num_heads)
    return pl.pallas_call(
        kern,
        out_shape=jax.ShapeDtypeStruct((B, S, E), x.dtype),
        grid_spec=pltpu.PrefetchScalarGridSpec(
            num_scalar_prefetch=0,
            grid=(B,),
            in_specs=[
                pl.BlockSpec((1, S, E), lambda b: (b, 0, 0)),       # x (per-batch)
                _spec((1, E), lambda b: (0, 0), buffers=1),         # ln1 scale
                _spec((1, E), lambda b: (0, 0), buffers=1),         # ln1 shift
                _spec((E, E), lambda b: (0, 0), buffers=1),         # Wq
                _spec((E, E), lambda b: (0, 0), buffers=1),         # Wk
                _spec((E, E), lambda b: (0, 0), buffers=1),         # Wv
                _spec((E, E), lambda b: (0, 0), buffers=1),         # Wo
                _spec((1, E), lambda b: (0, 0), buffers=1),         # bo
            ],
            out_specs=pl.BlockSpec((1, S, E), lambda b: (b, 0, 0)),
        ),
        compiler_params=pltpu.CompilerParams(
            dimension_semantics=("parallel",),
            vmem_limit_bytes=_VMEM_LIMIT),
    )(x, g1.reshape(1, E), s1.reshape(1, E), wq, wk, wv, wo, bo.reshape(1, E))


# ---------------------------------------------------------------------------
# Kernel 2: LayerNorm2 + FeedForward (Linear -> tanh-GELU -> Linear) + residual
# Grid: (M/bm "parallel", H/tH "arbitrary") with an f32 accumulator over H tiles.
# ---------------------------------------------------------------------------
def _ffn_block_kernel(x_ref, g2_ref, s2_ref, w1_ref, b1_ref, w2_ref, b2_ref,
                      o_ref, xn_ref, acc_ref):
    k = pl.program_id(1)

    @pl.when(k == 0)
    def _():
        xf = x_ref[...].astype(jnp.float32)
        mean = jnp.mean(xf, axis=-1, keepdims=True)
        var = jnp.mean((xf - mean) ** 2, axis=-1, keepdims=True)
        xn = (xf - mean) * lax.rsqrt(var + _EPS)
        xn = xn * g2_ref[...].astype(jnp.float32) + s2_ref[...].astype(jnp.float32)
        xn_ref[...] = xn.astype(xn_ref.dtype)           # reused across all H tiles
        # Fold second-linear bias into the accumulator init.
        acc_ref[...] = jnp.broadcast_to(b2_ref[...].astype(jnp.float32),
                                        acc_ref.shape)

    xn = xn_ref[...]
    h = jnp.dot(xn, w1_ref[...], preferred_element_type=jnp.float32)
    h = h + b1_ref[...].astype(jnp.float32)
    # GELU, tanh approximation (matches the torch GELU module).
    g = 0.5 * h * (1.0 + jnp.tanh(_GELU_C * (h + 0.044715 * (h * h * h))))
    acc_ref[...] += jnp.dot(g.astype(w2_ref.dtype), w2_ref[...],
                            preferred_element_type=jnp.float32)

    @pl.when(k == pl.num_programs(1) - 1)
    def _():
        o_ref[...] = (acc_ref[...] + x_ref[...].astype(jnp.float32)
                      ).astype(o_ref.dtype)             # residual add


def ffn_residual(x, g2, s2, w1, b1, w2, b2, *, block_m=256, block_h=512):
    B, S, E = x.shape
    H = w1.shape[1]
    M = B * S
    x2 = x.reshape(M, E)

    bm = min(block_m, M)                                 # multiple of 8 (or full M)
    tH = _pick_tile(H, (block_h, 1024, 512, 256, 128))   # H-tile must divide H
    grid = (pl.cdiv(M, bm), H // tH)

    out2 = pl.pallas_call(
        _ffn_block_kernel,
        out_shape=jax.ShapeDtypeStruct((M, E), x.dtype),
        grid_spec=pltpu.PrefetchScalarGridSpec(
            num_scalar_prefetch=0,
            grid=grid,
            in_specs=[
                pl.BlockSpec((bm, E), lambda i, k: (i, 0)),        # x rows
                _spec((1, E), lambda i, k: (0, 0), buffers=1),     # ln2 scale
                _spec((1, E), lambda i, k: (0, 0), buffers=1),     # ln2 shift
                pl.BlockSpec((E, tH), lambda i, k: (0, k)),        # W1 H-slice (pipelined)
                pl.BlockSpec((1, tH), lambda i, k: (0, k)),        # b1 H-slice
                pl.BlockSpec((tH, E), lambda i, k: (k, 0)),        # W2 H-slice (pipelined)
                _spec((1, E), lambda i, k: (0, 0), buffers=1),     # b2
            ],
            out_specs=pl.BlockSpec((bm, E), lambda i, k: (i, 0)),
            scratch_shapes=[
                pltpu.VMEM((bm, E), x.dtype),        # normed x, computed once per M tile
                pltpu.VMEM((bm, E), jnp.float32),    # f32 output accumulator
            ],
        ),
        compiler_params=pltpu.CompilerParams(
            dimension_semantics=("parallel", "arbitrary"),
            vmem_limit_bytes=_VMEM_LIMIT),
    )(x2, g2.reshape(1, E), s2.reshape(1, E),
      w1, b1.reshape(1, H), w2, b2.reshape(1, E))

    return out2.reshape(B, S, E)


def transformer_block(x, params, *, num_heads, block_m=256, block_h=512):
    """Full TransformerBlock forward. Dropout is identity (inference / rate 0)."""
    # TODO(synk): training-mode dropout (drop_rate > 0) is not implemented.
    y = attention_residual(x, params["ln1_scale"], params["ln1_shift"],
                           params["wq"], params["wk"], params["wv"],
                           params["wo"], params["bo"], num_heads=num_heads)
    z = ffn_residual(y, params["ln2_scale"], params["ln2_shift"],
                     params["w1"], params["b1"], params["w2"], params["b2"],
                     block_m=block_m, block_h=block_h)
    return z


# ---------------------------------------------------------------------------
# Pure-JAX reference (mirrors the PyTorch module)
# ---------------------------------------------------------------------------
def transformer_block_ref(x, params, *, num_heads):
    def ln(v, scale, shift):
        mean = v.mean(-1, keepdims=True)
        var = ((v - mean) ** 2).mean(-1, keepdims=True)
        return scale * (v - mean) / jnp.sqrt(var + _EPS) + shift

    B, S, E = x.shape
    hd = E // num_heads

    xn = ln(x, params["ln1_scale"], params["ln1_shift"])
    q = (xn @ params["wq"]).reshape(B, S, num_heads, hd).transpose(0, 2, 1, 3)
    k = (xn @ params["wk"]).reshape(B, S, num_heads, hd).transpose(0, 2, 1, 3)
    v = (xn @ params["wv"]).reshape(B, S, num_heads, hd).transpose(0, 2, 1, 3)
    scores = jnp.einsum("bhqd,bhkd->bhqk", q, k) / math.sqrt(hd)
    mask = jnp.triu(jnp.ones((S, S), dtype=bool), 1)
    scores = jnp.where(mask, -jnp.inf, scores)
    w = jax.nn.softmax(scores, axis=-1)
    ctx = jnp.einsum("bhqk,bhkd->bhqd", w, v).transpose(0, 2, 1, 3).reshape(B, S, E)
    y = x + (ctx @ params["wo"] + params["bo"])

    yn = ln(y, params["ln2_scale"], params["ln2_shift"])
    h = yn @ params["w1"] + params["b1"]
    g = 0.5 * h * (1.0 + jnp.tanh(_GELU_C * (h + 0.044715 * h ** 3)))
    z = y + (g @ params["w2"] + params["b2"])
    return z


if __name__ == "__main__":
    # config = {'emb_dim': 32, 'context_length': 8, 'n_heads': 2,
    #           'drop_rate': 0.0, 'qkv_bias': False}; batch=2, seq=8
    batch, seq, emb_dim, n_heads = 2, 8, 32, 2
    hidden = 4 * emb_dim

    key = jax.random.PRNGKey(0)
    ks = jax.random.split(key, 14)

    x = jax.random.normal(ks[0], (batch, seq, emb_dim), dtype=jnp.float32)
    params = {
        "ln1_scale": 1.0 + 0.1 * jax.random.normal(ks[1], (emb_dim,), jnp.float32),
        "ln1_shift": 0.1 * jax.random.normal(ks[2], (emb_dim,), jnp.float32),
        "wq": jax.random.normal(ks[3], (emb_dim, emb_dim), jnp.float32) * 0.02,
        "wk": jax.random.normal(ks[4], (emb_dim, emb_dim), jnp.float32) * 0.02,
        "wv": jax.random.normal(ks[5], (emb_dim, emb_dim), jnp.float32) * 0.02,
        "wo": jax.random.normal(ks[6], (emb_dim, emb_dim), jnp.float32) * 0.02,
        "bo": jax.random.normal(ks[7], (emb_dim,), jnp.float32) * 0.02,
        "ln2_scale": 1.0 + 0.1 * jax.random.normal(ks[8], (emb_dim,), jnp.float32),
        "ln2_shift": 0.1 * jax.random.normal(ks[9], (emb_dim,), jnp.float32),
        "w1": jax.random.normal(ks[10], (emb_dim, hidden), jnp.float32) * 0.02,
        "b1": jax.random.normal(ks[11], (hidden,), jnp.float32) * 0.02,
        "w2": jax.random.normal(ks[12], (hidden, emb_dim), jnp.float32) * 0.02,
        "b2": jax.random.normal(ks[13], (emb_dim,), jnp.float32) * 0.02,
    }

    out = transformer_block(x, params, num_heads=n_heads)
    out = jax.block_until_ready(out)

    ref = transformer_block_ref(x, params, num_heads=n_heads)
    assert out.shape == (batch, seq, emb_dim)
    max_diff = float(jnp.max(jnp.abs(out - ref)))
    assert jnp.allclose(out, ref, atol=1e-4, rtol=1e-4), (
        f"mismatch vs reference: max abs diff = {max_diff}")

    print("KERNEL_OK")
</pallas_src>

<mosaic_0001>
module attributes {stable_mosaic.version = 11 : i64} {
  func.func @_attn_block_kernel(%arg0: i32, %arg1: memref<1x8x32xf32, #tpu.memory_space<vmem>>, %arg2: memref<1x32xf32, #tpu.memory_space<vmem>>, %arg3: memref<1x32xf32, #tpu.memory_space<vmem>>, %arg4: memref<32x32xf32, #tpu.memory_space<vmem>>, %arg5: memref<32x32xf32, #tpu.memory_space<vmem>>, %arg6: memref<32x32xf32, #tpu.memory_space<vmem>>, %arg7: memref<32x32xf32, #tpu.memory_space<vmem>>, %arg8: memref<1x32xf32, #tpu.memory_space<vmem>>, %arg9: memref<1x8x32xf32, #tpu.memory_space<vmem>>) attributes {dimension_semantics = [#tpu.dimension_semantics<parallel>], iteration_bounds = array<i64: 2>, scalar_prefetch = 0 : i64, scratch_operands = 0 : i64, tpu.core_type = #tpu.core_type<tc>, window_params = [{transform_indices = @transform_0, window_bounds = array<i64: 1, 8, 32>}, {pipeline_mode = #tpu.pipeline_mode<synchronous>, transform_indices = @transform_1, window_bounds = array<i64: 1, 32>}, {pipeline_mode = #tpu.pipeline_mode<synchronous>, transform_indices = @transform_2, window_bounds = array<i64: 1, 32>}, {pipeline_mode = #tpu.pipeline_mode<synchronous>, transform_indices = @transform_3, window_bounds = array<i64: 32, 32>}, {pipeline_mode = #tpu.pipeline_mode<synchronous>, transform_indices = @transform_4, window_bounds = array<i64: 32, 32>}, {pipeline_mode = #tpu.pipeline_mode<synchronous>, transform_indices = @transform_5, window_bounds = array<i64: 32, 32>}, {pipeline_mode = #tpu.pipeline_mode<synchronous>, transform_indices = @transform_6, window_bounds = array<i64: 32, 32>}, {pipeline_mode = #tpu.pipeline_mode<synchronous>, transform_indices = @transform_7, window_bounds = array<i64: 1, 32>}, {transform_indices = @transform_8, window_bounds = array<i64: 1, 8, 32>}]} {
    %c0 = arith.constant 0 : index
    %c0_0 = arith.constant 0 : index
    %c0_1 = arith.constant 0 : index
    %0 = vector.load %arg1[%c0, %c0_0, %c0_1] : memref<1x8x32xf32, #tpu.memory_space<vmem>>, vector<1x8x32xf32>
    %1 = vector.shape_cast %0 : vector<1x8x32xf32> to vector<8x32xf32>
    %cst = arith.constant dense<0.000000e+00> : vector<8xf32>
    %2 = vector.multi_reduction <add>, %1, %cst [1] : vector<8x32xf32> to vector<8xf32>
    %3 = vector.shape_cast %2 : vector<8xf32> to vector<8x1xf32>
    %cst_2 = arith.constant 3.200000e+01 : f32
    %4 = vector.broadcast %cst_2 : f32 to vector<8x1xf32>
    %5 = arith.divf %3, %4 : vector<8x1xf32>
    %6 = vector.broadcast %5 : vector<8x1xf32> to vector<8x32xf32>
    %7 = arith.subf %1, %6 : vector<8x32xf32>
    %8 = arith.mulf %7, %7 : vector<8x32xf32>
    %cst_3 = arith.constant dense<0.000000e+00> : vector<8xf32>
    %9 = vector.multi_reduction <add>, %8, %cst_3 [1] : vector<8x32xf32> to vector<8xf32>
    %10 = vector.shape_cast %9 : vector<8xf32> to vector<8x1xf32>
    %cst_4 = arith.constant 3.200000e+01 : f32
    %11 = vector.broadcast %cst_4 : f32 to vector<8x1xf32>
    %12 = arith.divf %10, %11 : vector<8x1xf32>
    %13 = vector.broadcast %5 : vector<8x1xf32> to vector<8x32xf32>
    %14 = arith.subf %1, %13 : vector<8x32xf32>
    %cst_5 = arith.constant 9.99999974E-6 : f32
    %15 = vector.broadcast %cst_5 : f32 to vector<8x1xf32>
    %16 = arith.addf %12, %15 : vector<8x1xf32>
    %17 = math.rsqrt %16 : vector<8x1xf32>
    %18 = vector.broadcast %17 : vector<8x1xf32> to vector<8x32xf32>
    %19 = arith.mulf %14, %18 : vector<8x32xf32>
    %c0_6 = arith.constant 0 : index
    %c0_7 = arith.constant 0 : index
    %20 = vector.load %arg2[%c0_6, %c0_7] : memref<1x32xf32, #tpu.memory_space<vmem>>, vector<1x32xf32>
    %21 = vector.broadcast %20 : vector<1x32xf32> to vector<8x32xf32>
    %22 = arith.mulf %19, %21 : vector<8x32xf32>
    %c0_8 = arith.constant 0 : index
    %c0_9 = arith.constant 0 : index
    %23 = vector.load %arg3[%c0_8, %c0_9] : memref<1x32xf32, #tpu.memory_space<vmem>>, vector<1x32xf32>
    %24 = vector.broadcast %23 : vector<1x32xf32> to vector<8x32xf32>
    %25 = arith.addf %22, %24 : vector<8x32xf32>
    %c0_10 = arith.constant 0 : index
    %c0_11 = arith.constant 0 : index
    %26 = vector.load %arg4[%c0_10, %c0_11] : memref<32x32xf32, #tpu.memory_space<vmem>>, vector<32x32xf32>
    %cst_12 = arith.constant dense<0.000000e+00> : vector<8x32xf32>
    %27 = tpu.matmul %25, %26, %cst_12 {dimension_numbers = #tpu.dot_dimension_numbers<[1], [0], [0], [1], [0, 0, 1, 1], [], []>} : vector<8x32xf32>, vector<32x32xf32>, vector<8x32xf32> -> vector<8x32xf32>
    %c0_13 = arith.constant 0 : index
    %c0_14 = arith.constant 0 : index
    %28 = vector.load %arg5[%c0_13, %c0_14] : memref<32x32xf32, #tpu.memory_space<vmem>>, vector<32x32xf32>
    %cst_15 = arith.constant dense<0.000000e+00> : vector<8x32xf32>
    %29 = tpu.matmul %25, %28, %cst_15 {dimension_numbers = #tpu.dot_dimension_numbers<[1], [0], [0], [1], [0, 0, 1, 1], [], []>} : vector<8x32xf32>, vector<32x32xf32>, vector<8x32xf32> -> vector<8x32xf32>
    %c0_16 = arith.constant 0 : index
    %c0_17 = arith.constant 0 : index
    %30 = vector.load %arg6[%c0_16, %c0_17] : memref<32x32xf32, #tpu.memory_space<vmem>>, vector<32x32xf32>
    %cst_18 = arith.constant dense<0.000000e+00> : vector<8x32xf32>
    %31 = tpu.matmul %25, %30, %cst_18 {dimension_numbers = #tpu.dot_dimension_numbers<[1], [0], [0], [1], [0, 0, 1, 1], [], []>} : vector<8x32xf32>, vector<32x32xf32>, vector<8x32xf32> -> vector<8x32xf32>
    %32 = tpu.iota {dimensions = array<i32: 0>} : vector<8x8xi32>
    %33 = tpu.iota {dimensions = array<i32: 1>} : vector<8x8xi32>
    %34 = arith.cmpi sle, %33, %32 : vector<8x8xi32>
    %c0_19 = arith.constant 0 : index
    %c0_20 = arith.constant 0 : index
    %35 = vector.load %arg7[%c0_19, %c0_20] : memref<32x32xf32, #tpu.memory_space<vmem>>, vector<32x32xf32>
    %c0_21 = arith.constant 0 : index
    %c0_22 = arith.constant 0 : index
    %36 = vector.load %arg8[%c0_21, %c0_22] : memref<1x32xf32, #tpu.memory_space<vmem>>, vector<1x32xf32>
    %37 = vector.shape_cast %36 : vector<1x32xf32> to vector<1x32xf32>
    %38 = vector.broadcast %37 : vector<1x32xf32> to vector<8x32xf32>
    %39 = vector.extract_strided_slice %27 {offsets = [0, 0], sizes = [8, 16], strides = [1, 1]} : vector<8x32xf32> to vector<8x16xf32>
    %40 = vector.extract_strided_slice %29 {offsets = [0, 0], sizes = [8, 16], strides = [1, 1]} : vector<8x32xf32> to vector<8x16xf32>
    %41 = vector.extract_strided_slice %31 {offsets = [0, 0], sizes = [8, 16], strides = [1, 1]} : vector<8x32xf32> to vector<8x16xf32>
    %cst_23 = arith.constant dense<0.000000e+00> : vector<8x8xf32>
    %42 = tpu.matmul %39, %40, %cst_23 {dimension_numbers = #tpu.dot_dimension_numbers<[1], [1], [0], [0], [0, 0, 1, 0], [], []>} : vector<8x16xf32>, vector<8x16xf32>, vector<8x8xf32> -> vector<8x8xf32>
    %cst_24 = arith.constant 2.500000e-01 : f32
    %43 = vector.broadcast %cst_24 : f32 to vector<8x8xf32>
    %44 = arith.mulf %42, %43 : vector<8x8xf32>
    %cst_25 = arith.constant 0xFF800000 : f32
    %45 = vector.broadcast %cst_25 : f32 to vector<8x8xf32>
    %46 = arith.select %34, %44, %45 : vector<8x8xi1>, vector<8x8xf32>
    %cst_26 = arith.constant dense<0xFF800000> : vector<8xf32>
    %47 = vector.multi_reduction <maximumf>, %46, %cst_26 [1] : vector<8x8xf32> to vector<8xf32>
    %48 = vector.shape_cast %47 : vector<8xf32> to vector<8x1xf32>
    %49 = vector.broadcast %48 : vector<8x1xf32> to vector<8x8xf32>
    %50 = arith.subf %46, %49 : vector<8x8xf32>
    %51 = math.exp %50 : vector<8x8xf32>
    %cst_27 = arith.constant dense<0.000000e+00> : vector<8xf32>
    %52 = vector.multi_reduction <add>, %51, %cst_27 [1] : vector<8x8xf32> to vector<8xf32>
    %53 = vector.shape_cast %52 : vector<8xf32> to vector<8x1xf32>
    %54 = vector.broadcast %53 : vector<8x1xf32> to vector<8x8xf32>
    %55 = arith.divf %51, %54 : vector<8x8xf32>
    %cst_28 = arith.constant dense<0.000000e+00> : vector<8x16xf32>
    %56 = tpu.matmul %55, %41, %cst_28 {dimension_numbers = #tpu.dot_dimension_numbers<[1], [0], [0], [1], [0, 0, 1, 1], [], []>} : vector<8x8xf32>, vector<8x16xf32>, vector<8x16xf32> -> vector<8x16xf32>
    %57 = vector.extract_strided_slice %35 {offsets = [0, 0], sizes = [16, 32], strides = [1, 1]} : vector<32x32xf32> to vector<16x32xf32>
    %cst_29 = arith.constant dense<0.000000e+00> : vector<8x32xf32>
    %58 = tpu.matmul %56, %57, %cst_29 {dimension_numbers = #tpu.dot_dimension_numbers<[1], [0], [0], [1], [0, 0, 1, 1], [], []>} : vector<8x16xf32>, vector<16x32xf32>, vector<8x32xf32> -> vector<8x32xf32>
    %59 = arith.addf %38, %58 : vector<8x32xf32>
    %60 = vector.extract_strided_slice %27 {offsets = [0, 16], sizes = [8, 16], strides = [1, 1]} : vector<8x32xf32> to vector<8x16xf32>
    %61 = vector.extract_strided_slice %29 {offsets = [0, 16], sizes = [8, 16], strides = [1, 1]} : vector<8x32xf32> to vector<8x16xf32>
    %62 = vector.extract_strided_slice %31 {offsets = [0, 16], sizes = [8, 16], strides = [1, 1]} : vector<8x32xf32> to vector<8x16xf32>
    %cst_30 = arith.constant dense<0.000000e+00> : vector<8x8xf32>
    %63 = tpu.matmul %60, %61, %cst_30 {dimension_numbers = #tpu.dot_dimension_numbers<[1], [1], [0], [0], [0, 0, 1, 0], [], []>} : vector<8x16xf32>, vector<8x16xf32>, vector<8x8xf32> -> vector<8x8xf32>
    %cst_31 = arith.constant 2.500000e-01 : f32
    %64 = vector.broadcast %cst_31 : f32 to vector<8x8xf32>
    %65 = arith.mulf %63, %64 : vector<8x8xf32>
    %cst_32 = arith.constant 0xFF800000 : f32
    %66 = vector.broadcast %cst_32 : f32 to vector<8x8xf32>
    %67 = arith.select %34, %65, %66 : vector<8x8xi1>, vector<8x8xf32>
    %cst_33 = arith.constant dense<0xFF800000> : vector<8xf32>
    %68 = vector.multi_reduction <maximumf>, %67, %cst_33 [1] : vector<8x8xf32> to vector<8xf32>
    %69 = vector.shape_cast %68 : vector<8xf32> to vector<8x1xf32>
    %70 = vector.broadcast %69 : vector<8x1xf32> to vector<8x8xf32>
    %71 = arith.subf %67, %70 : vector<8x8xf32>
    %72 = math.exp %71 : vector<8x8xf32>
    %cst_34 = arith.constant dense<0.000000e+00> : vector<8xf32>
    %73 = vector.multi_reduction <add>, %72, %cst_34 [1] : vector<8x8xf32> to vector<8xf32>
    %74 = vector.shape_cast %73 : vector<8xf32> to vector<8x1xf32>
    %75 = vector.broadcast %74 : vector<8x1xf32> to vector<8x8xf32>
    %76 = arith.divf %72, %75 : vector<8x8xf32>
    %cst_35 = arith.constant dense<0.000000e+00> : vector<8x16xf32>
    %77 = tpu.matmul %76, %62, %cst_35 {dimension_numbers = #tpu.dot_dimension_numbers<[1], [0], [0], [1], [0, 0, 1, 1], [], []>} : vector<8x8xf32>, vector<8x16xf32>, vector<8x16xf32> -> vector<8x16xf32>
    %78 = vector.extract_strided_slice %35 {offsets = [16, 0], sizes = [16, 32], strides = [1, 1]} : vector<32x32xf32> to vector<16x32xf32>
    %cst_36 = arith.constant dense<0.000000e+00> : vector<8x32xf32>
    %79 = tpu.matmul %77, %78, %cst_36 {dimension_numbers = #tpu.dot_dimension_numbers<[1], [0], [0], [1], [0, 0, 1, 1], [], []>} : vector<8x16xf32>, vector<16x32xf32>, vector<8x32xf32> -> vector<8x32xf32>
    %80 = arith.addf %59, %79 : vector<8x32xf32>
    %81 = arith.addf %80, %1 : vector<8x32xf32>
    %c0_37 = arith.constant 0 : index
    %c0_38 = arith.constant 0 : index
    %c0_39 = arith.constant 0 : index
    %82 = vector.load %arg9[%c0_37, %c0_38, %c0_39] : memref<1x8x32xf32, #tpu.memory_space<vmem>>, vector<1x8x32xf32>
    %83 = vector.shape_cast %82 : vector<1x8x32xf32> to vector<8x32xf32>
    %84 = vector.shape_cast %81 : vector<8x32xf32> to vector<1x8x32xf32>
    tpu.vector_store %arg9[%c0_37, %c0_38, %c0_39], %84 {strides = array<i32>} : memref<1x8x32xf32, #tpu.memory_space<vmem>>, vector<1x8x32xf32>,
    return
  }
  func.func @transform_0(%arg0: i32) -> (i32, i32, i32) {
    %c0_i32 = arith.constant 0 : i32
    %c0_i32_0 = arith.constant 0 : i32
    %c0_i32_1 = arith.constant 0 : i32
    return %arg0, %c0_i32, %c0_i32_0 : i32, i32, i32
  }
  func.func @transform_1(%arg0: i32) -> (i32, i32) {
    %c0_i32 = arith.constant 0 : i32
    %c0_i32_0 = arith.constant 0 : i32
    %c0_i32_1 = arith.constant 0 : i32
    return %c0_i32, %c0_i32_0 : i32, i32
  }
  func.func @transform_2(%arg0: i32) -> (i32, i32) {
    %c0_i32 = arith.constant 0 : i32
    %c0_i32_0 = arith.constant 0 : i32
    %c0_i32_1 = arith.constant 0 : i32
    return %c0_i32, %c0_i32_0 : i32, i32
  }
  func.func @transform_3(%arg0: i32) -> (i32, i32) {
    %c0_i32 = arith.constant 0 : i32
    %c0_i32_0 = arith.constant 0 : i32
    %c0_i32_1 = arith.constant 0 : i32
    return %c0_i32, %c0_i32_0 : i32, i32
  }
  func.func @transform_4(%arg0: i32) -> (i32, i32) {
    %c0_i32 = arith.constant 0 : i32
    %c0_i32_0 = arith.constant 0 : i32
    %c0_i32_1 = arith.constant 0 : i32
    return %c0_i32, %c0_i32_0 : i32, i32
  }
  func.func @transform_5(%arg0: i32) -> (i32, i32) {
    %c0_i32 = arith.constant 0 : i32
    %c0_i32_0 = arith.constant 0 : i32
    %c0_i32_1 = arith.constant 0 : i32
    return %c0_i32, %c0_i32_0 : i32, i32
  }
  func.func @transform_6(%arg0: i32) -> (i32, i32) {
    %c0_i32 = arith.constant 0 : i32
    %c0_i32_0 = arith.constant 0 : i32
    %c0_i32_1 = arith.constant 0 : i32
    return %c0_i32, %c0_i32_0 : i32, i32
  }
  func.func @transform_7(%arg0: i32) -> (i32, i32) {
    %c0_i32 = arith.constant 0 : i32
    %c0_i32_0 = arith.constant 0 : i32
    %c0_i32_1 = arith.constant 0 : i32
    return %c0_i32, %c0_i32_0 : i32, i32
  }
  func.func @transform_8(%arg0: i32) -> (i32, i32, i32) {
    %c0_i32 = arith.constant 0 : i32
    %c0_i32_0 = arith.constant 0 : i32
    %c0_i32_1 = arith.constant 0 : i32
    return %arg0, %c0_i32, %c0_i32_0 : i32, i32, i32
  }
}

</mosaic_0001>

<llo_original>
// kernel: tpu_custom_call.1
$region0: #{tpu_custom_call.1}
  #allocation0 [shape = 'u32[]', space=smem, size = 0x4, offset = 0x4, fixed_abs, tag = 'smem constant byte address 0x4 - core index']
  #allocation1 [shape = 'u32[72,128]{1,0:T(1,128)}', space=vmem, size = 0x9000, scoped, tag = 'internal scratch']
  %s0 = inlined_call_operand.hbm [shape: f32[2,8,32], index: 0, kind: input, shape index: {}]
  %s1 = inlined_call_operand.hbm [shape: f32[1,32], index: 1, kind: input, shape index: {}]
  %s2 = inlined_call_operand.vmem [shape: f32[1,32], index: 2, kind: input, shape index: {}]
  %s3 = inlined_call_operand.hbm [shape: f32[32,32], index: 3, kind: input, shape index: {}]
  %s4 = inlined_call_operand.hbm [shape: f32[32,32], index: 4, kind: input, shape index: {}]
  %s5 = inlined_call_operand.hbm [shape: f32[32,32], index: 5, kind: input, shape index: {}]
  %s6 = inlined_call_operand.hbm [shape: f32[32,32], index: 6, kind: input, shape index: {}]
  %s7 = inlined_call_operand.vmem [shape: f32[1,32], index: 7, kind: input, shape index: {}]
  %s8 = inlined_call_operand.hbm [shape: f32[2,8,32], index: 8, kind: output, shape index: {}]
  %s9 = sld [smem:[#allocation0]]
  $region89: #{tpu_custom_call.1} parent=0
    _
  %s11 = ssub.s32 1, %s9
  %s12 = scalar_select 0, %s11, %s9
  $region1: #{tpu_custom_call.1} parent=0
    #allocation2 [shape = 'u8[8192]{0}', space=vmem, size = 0x2000, scoped, tag = 'input window, operand 0']
    #allocation3 [shape = 's32[2]{0}', space=sflag, size = 0x8, scoped, tag = 'scoped memory for tpu_custom_call.1']
    #allocation4 [shape = 's32[2]{0}', space=sflag, size = 0x8, scoped, tag = 'scoped memory for tpu_custom_call.1']
    #allocation5 [shape = 'u8[512]{0}', space=vmem, size = 0x400, scoped, tag = 'input window, operand 1, single buffered']
    #allocation6 [shape = 's32[1]{0}', space=sflag, size = 0x4, scoped, tag = 'scoped memory for tpu_custom_call.1']
    #allocation7 [shape = 'u8[16384]{0}', space=vmem, size = 0x4000, scoped, tag = 'input window, operand 3, single buffered']
    #allocation8 [shape = 'u8[16384]{0}', space=vmem, size = 0x4000, scoped, tag = 'input window, operand 4, single buffered']
    #allocation9 [shape = 's32[1]{0}', space=sflag, size = 0x4, scoped, tag = 'scoped memory for tpu_custom_call.1']
    #allocation10 [shape = 'u8[16384]{0}', space=vmem, size = 0x4000, scoped, tag = 'input window, operand 5, single buffered']
    #allocation11 [shape = 'u8[16384]{0}', space=vmem, size = 0x4000, scoped, tag = 'input window, operand 6, single buffered']
    #allocation12 [shape = 's32[1]{0}', space=sflag, size = 0x4, scoped, tag = 'scoped memory for tpu_custom_call.1']
    #allocation13 [shape = 'u8[8192]{0}', space=vmem, size = 0x2000, scoped, tag = 'output window, operand 0']
    %13 = vsyncpa [#allocation3], 0
    %s14 = scalar_lea.sflag [#allocation3], 1
    %15 = vsyncpa %s14, 0
    %16 = vsyncpa [#allocation6], 0
    %17 = vsyncpa [#allocation9], 0
    %18 = vsyncpa [#allocation12], 0
    %19 = vsyncpa [#allocation4], 0
    %s20 = scalar_lea.sflag [#allocation4], 1
    %21 = vsyncpa %s20, 0
    loop: start=0, step=1, limit=4
    $region2: #{tpu_custom_call.1} parent=1 // loop_pre_header
      _
    $region3: #{tpu_custom_call.1} parent=1 // loop_header
      %s23 = sphi 0, %s27
      %p24 = scmp.ge.s32.totalorder %s23, 4
      %s33 = sphi 0, %s35
      %s36 = sphi 0, %s33
      %s37 = sphi 0, %s36
      %s53 = sphi 0, %s37
      %s57 = sphi 0, %s57
      %s59 = sphi 0, %s57
      %s60 = sphi 0, %s59
      %s74 = sphi 0, %s60
      %s78 = sphi 0, %s78
      %s80 = sphi 0, %s78
      %s81 = sphi 0, %s80
      %s95 = sphi 0, %s81
      %s99 = sphi 0, %s99
      %s101 = sphi 0, %s99
      %s102 = sphi 0, %s101
      %s116 = sphi 0, %s102
      %s120 = sphi 0, %s120
      %s122 = sphi 0, %s120
      %s123 = sphi 0, %s122
      %s137 = sphi 0, %s123
      %s141 = sphi 0, %s141
      %s143 = sphi 0, %s141
      %s144 = sphi 0, %s143
      %s158 = sphi 0, %s144
      %s162 = sphi 0, %s162
      %s164 = sphi 0, %s162
      %s165 = sphi 0, %s164
      %s179 = sphi 0, %s165
      %s183 = sphi 0, %s183
      %s185 = sphi 0, %s183
      %s186 = sphi 0, %s185
      %s200 = sphi 0, %s186
      %s206 = sphi 0, %s208
      %s209 = sphi 0, %s206
      %s210 = sphi 0, %s209
      %s226 = sphi 0, %s210
    $region4: #{tpu_custom_call.1} parent=1 // loop_header_branch
      %26 = sbr.rel (%p24) target = $region8
    $region5: #{tpu_custom_call.1} parent=1 // loop_body
      %s28 = ssub.s32 %s23, 1
      %s29 = ssub.s32 %s23, 2
      %s30 = sadd.s32 %s23, 1
      %s31 = ssub.s32 %s23, %s30
      %p32 = scmp.eq.s32.totalorder %s31, 0
      %s34 = sadd.s32 %s33, 1
      %s35 = scalar_select %p32, %s33, %s34
      %p38 = pneg %p32
      %p39 = scmp.eq.s32.totalorder %s23, 1
      %p40 = por %p38, %p39
      %p41 = scmp.ne.s32.totalorder %s33, %s36
      %p42 = scmp.eq.s32.totalorder %s23, 0
      %p43 = por %p41, %p42
      %p44 = scmp.ne.s32.totalorder %s33, %s36
      %p45 = scmp.eq.s32.totalorder %s28, 1
      %p46 = por %p44, %p45
      %p47 = scmp.ne.s32.totalorder %s36, %s37
      %p48 = scmp.eq.s32.totalorder %s28, 0
      %p49 = por %p47, %p48
      %p50 = scmp.ne.s32.totalorder %s36, %s37
      %p51 = scmp.eq.s32.totalorder %s29, 1
      %p52 = por %p50, %p51
      %p54 = scmp.ne.s32.totalorder %s37, %s53
      %p55 = scmp.eq.s32.totalorder %s29, 0
      %p56 = por %p54, %p55
      %s58 = sadd.s32 %s57, 1
      %p61 = scmp.eq.s32.totalorder %s23, 1
      %p62 = scmp.ne.s32.totalorder %s57, %s59
      %p63 = scmp.eq.s32.totalorder %s23, 0
      %p64 = por %p62, %p63
      %p65 = scmp.ne.s32.totalorder %s57, %s59
      %p66 = scmp.eq.s32.totalorder %s28, 1
      %p67 = por %p65, %p66
      %p68 = scmp.ne.s32.totalorder %s59, %s60
      %p69 = scmp.eq.s32.totalorder %s28, 0
      %p70 = por %p68, %p69
      %p71 = scmp.ne.s32.totalorder %s59, %s60
      %p72 = scmp.eq.s32.totalorder %s29, 1
      %p73 = por %p71, %p72
      %p75 = scmp.ne.s32.totalorder %s60, %s74
      %p76 = scmp.eq.s32.totalorder %s29, 0
      %p77 = por %p75, %p76
      %s79 = sadd.s32 %s78, 1
      %p82 = scmp.eq.s32.totalorder %s23, 1
      %p83 = scmp.ne.s32.totalorder %s78, %s80
      %p84 = scmp.eq.s32.totalorder %s23, 0
      %p85 = por %p83, %p84
      %p86 = scmp.ne.s32.totalorder %s78, %s80
      %p87 = scmp.eq.s32.totalorder %s28, 1
      %p88 = por %p86, %p87
      %p89 = scmp.ne.s32.totalorder %s80, %s81
      %p90 = scmp.eq.s32.totalorder %s28, 0
      %p91 = por %p89, %p90
      %p92 = scmp.ne.s32.totalorder %s80, %s81
      %p93 = scmp.eq.s32.totalorder %s29, 1
      %p94 = por %p92, %p93
      %p96 = scmp.ne.s32.totalorder %s81, %s95
      %p97 = scmp.eq.s32.totalorder %s29, 0
      %p98 = por %p96, %p97
      %s100 = sadd.s32 %s99, 1
      %p103 = scmp.eq.s32.totalorder %s23, 1
      %p104 = scmp.ne.s32.totalorder %s99, %s101
      %p105 = scmp.eq.s32.totalorder %s23, 0
      %p106 = por %p104, %p105
      %p107 = scmp.ne.s32.totalorder %s99, %s101
      %p108 = scmp.eq.s32.totalorder %s28, 1
      %p109 = por %p107, %p108
      %p110 = scmp.ne.s32.totalorder %s101, %s102
      %p111 = scmp.eq.s32.totalorder %s28, 0
      %p112 = por %p110, %p111
      %p113 = scmp.ne.s32.totalorder %s101, %s102
      %p114 = scmp.eq.s32.totalorder %s29, 1
      %p115 = por %p113, %p114
      %p117 = scmp.ne.s32.totalorder %s102, %s116
      %p118 = scmp.eq.s32.totalorder %s29, 0
      %p119 = por %p117, %p118
      %s121 = sadd.s32 %s120, 1
      %p124 = scmp.eq.s32.totalorder %s23, 1
      %p125 = scmp.ne.s32.totalorder %s120, %s122
      %p126 = scmp.eq.s32.totalorder %s23, 0
      %p127 = por %p125, %p126
      %p128 = scmp.ne.s32.totalorder %s120, %s122
      %p129 = scmp.eq.s32.totalorder %s28, 1
      %p130 = por %p128, %p129
      %p131 = scmp.ne.s32.totalorder %s122, %s123
      %p132 = scmp.eq.s32.totalorder %s28, 0
      %p133 = por %p131, %p132
      %p134 = scmp.ne.s32.totalorder %s122, %s123
      %p135 = scmp.eq.s32.totalorder %s29, 1
      %p136 = por %p134, %p135
      %p138 = scmp.ne.s32.totalorder %s123, %s137
      %p139 = scmp.eq.s32.totalorder %s29, 0
      %p140 = por %p138, %p139
      %s142 = sadd.s32 %s141, 1
      %p145 = scmp.eq.s32.totalorder %s23, 1
      %p146 = scmp.ne.s32.totalorder %s141, %s143
      %p147 = scmp.eq.s32.totalorder %s23, 0
      %p148 = por %p146, %p147
      %p149 = scmp.ne.s32.totalorder %s141, %s143
      %p150 = scmp.eq.s32.totalorder %s28, 1
      %p151 = por %p149, %p150
      %p152 = scmp.ne.s32.totalorder %s143, %s144
      %p153 = scmp.eq.s32.totalorder %s28, 0
      %p154 = por %p152, %p153
      %p155 = scmp.ne.s32.totalorder %s143, %s144
      %p156 = scmp.eq.s32.totalorder %s29, 1
      %p157 = por %p155, %p156
      %p159 = scmp.ne.s32.totalorder %s144, %s158
      %p160 = scmp.eq.s32.totalorder %s29, 0
      %p161 = por %p159, %p160
      %s163 = sadd.s32 %s162, 1
      %p166 = scmp.eq.s32.totalorder %s23, 1
      %p167 = scmp.ne.s32.totalorder %s162, %s164
      %p168 = scmp.eq.s32.totalorder %s23, 0
      %p169 = por %p167, %p168
      %p170 = scmp.ne.s32.totalorder %s162, %s164
      %p171 = scmp.eq.s32.totalorder %s28, 1
      %p172 = por %p170, %p171
      %p173 = scmp.ne.s32.totalorder %s164, %s165
      %p174 = scmp.eq.s32.totalorder %s28, 0
      %p175 = por %p173, %p174
      %p176 = scmp.ne.s32.totalorder %s164, %s165
      %p177 = scmp.eq.s32.totalorder %s29, 1
      %p178 = por %p176, %p177
      %p180 = scmp.ne.s32.totalorder %s165, %s179
      %p181 = scmp.eq.s32.totalorder %s29, 0
      %p182 = por %p180, %p181
      %s184 = sadd.s32 %s183, 1
      %p187 = scmp.eq.s32.totalorder %s23, 1
      %p188 = scmp.ne.s32.totalorder %s183, %s185
      %p189 = scmp.eq.s32.totalorder %s23, 0
      %p190 = por %p188, %p189
      %p191 = scmp.ne.s32.totalorder %s183, %s185
      %p192 = scmp.eq.s32.totalorder %s28, 1
      %p193 = por %p191, %p192
      %p194 = scmp.ne.s32.totalorder %s185, %s186
      %p195 = scmp.eq.s32.totalorder %s28, 0
      %p196 = por %p194, %p195
      %p197 = scmp.ne.s32.totalorder %s185, %s186
      %p198 = scmp.eq.s32.totalorder %s29, 1
      %p199 = por %p197, %p198
      %p201 = scmp.ne.s32.totalorder %s186, %s200
      %p202 = scmp.eq.s32.totalorder %s29, 0
      %p203 = por %p201, %p202
      %s204 = ssub.s32 %s23, %s30
      %p205 = scmp.eq.s32.totalorder %s204, 0
      %s207 = sadd.s32 %s206, 1
      %s208 = scalar_select %p205, %s206, %s207
      %p211 = pneg %p205
      %p212 = scmp.eq.s32.totalorder %s23, 1
      %p213 = por %p211, %p212
      %p214 = scmp.ne.s32.totalorder %s206, %s209
      %p215 = scmp.eq.s32.totalorder %s23, 0
      %p216 = por %p214, %p215
      %p217 = scmp.ne.s32.totalorder %s206, %s209
      %p218 = scmp.eq.s32.totalorder %s28, 1
      %p219 = por %p217, %p218
      %p220 = scmp.ne.s32.totalorder %s209, %s210
      %p221 = scmp.eq.s32.totalorder %s28, 0
      %p222 = por %p220, %p221
      %p223 = scmp.ne.s32.totalorder %s209, %s210
      %p224 = scmp.eq.s32.totalorder %s29, 1
      %p225 = por %p223, %p224
      %p227 = scmp.ne.s32.totalorder %s210, %s226
      %p228 = scmp.eq.s32.totalorder %s29, 0
      %p229 = por %p227, %p228
      %p230 = scmp.le.s32.totalorder 1, %s23
      %p231 = scmp.lt.s32.totalorder %s23, 3
      %p232 = pnand %p230, %p231
      %p233 = pneg %p232
      // Predicated region
      $region9: #{tpu_custom_call.1} parent=5 // pred_check
        _
      $region10: #{tpu_custom_call.1} parent=5 // pred_check_branch
        %235 = sbr.rel (%p232) target = $region12
      $region11: #{tpu_custom_call.1} parent=5 // pred_region
        %s236 = ssub.s32 %s23, 1
        // Predicated region
        $region13: #{tpu_custom_call.1} parent=11 // pred_check
          %p237 = pneg %p70
        $region14: #{tpu_custom_call.1} parent=11 // pred_check_branch
          %239 = sbr.rel (%p237) target = $region16
        $region15: #{tpu_custom_call.1} parent=11 // pred_region
          %241 = vsyncadd [#allocation6], 0
          %s243 = sshll.u32 %s1, 4
          %s244 = int_to_ptr.hbm [resolvable:$true] %s243
          %s245 = sshll.u32 [#allocation5], 4
          %s246 = int_to_ptr.vmem [resolvable:$true] %s245
          %248 = dma.hbm_to_vmem [thread:$0]  %s244, 16, %s246, [#allocation6]
        $region16: #{tpu_custom_call.1} parent=11 // pred_fallthru
          _
        // Predicated region
        $region17: #{tpu_custom_call.1} parent=11 // pred_check
          %p249 = pneg %p91
        $region18: #{tpu_custom_call.1} parent=11 // pred_check_branch
          %251 = sbr.rel (%p249) target = $region20
        $region19: #{tpu_custom_call.1} parent=11 // pred_region
          _
        $region20: #{tpu_custom_call.1} parent=11 // pred_fallthru
          _
        // Predicated region
        $region21: #{tpu_custom_call.1} parent=11 // pred_check
          %p252 = pneg %p112
        $region22: #{tpu_custom_call.1} parent=11 // pred_check_branch
          %254 = sbr.rel (%p252) target = $region24
        $region23: #{tpu_custom_call.1} parent=11 // pred_region
          %256 = vsyncadd [#allocation6], 0
          %s257 = sshll.u32 %s3, 4
          %s258 = int_to_ptr.hbm [resolvable:$true] %s257
          %s259 = sshll.u32 [#allocation7], 4
          %s260 = int_to_ptr.vmem [resolvable:$true] %s259
          %265 = dma.hbm_to_vmem [thread:$0]  %s258, 512, %s260, [#allocation6], 128, 128, 8
        $region24: #{tpu_custom_call.1} parent=11 // pred_fallthru
          _
        // Predicated region
        $region25: #{tpu_custom_call.1} parent=11 // pred_check
          %p266 = pneg %p133
        $region26: #{tpu_custom_call.1} parent=11 // pred_check_branch
          %268 = sbr.rel (%p266) target = $region28
        $region27: #{tpu_custom_call.1} parent=11 // pred_region
          %270 = vsyncadd [#allocation9], 0
          %s271 = sshll.u32 %s4, 4
          %s272 = int_to_ptr.hbm [resolvable:$true] %s271
          %s273 = sshll.u32 [#allocation8], 4
          %s274 = int_to_ptr.vmem [resolvable:$true] %s273
          %279 = dma.hbm_to_vmem [thread:$0]  %s272, 512, %s274, [#allocation9], 128, 128, 8
        $region28: #{tpu_custom_call.1} parent=11 // pred_fallthru
          _
        // Predicated region
        $region29: #{tpu_custom_call.1} parent=11 // pred_check
          %p280 = pneg %p154
        $region30: #{tpu_custom_call.1} parent=11 // pred_check_branch
          %282 = sbr.rel (%p280) target = $region32
        $region31: #{tpu_custom_call.1} parent=11 // pred_region
          %284 = vsyncadd [#allocation9], 0
          %s285 = sshll.u32 %s5, 4
          %s286 = int_to_ptr.hbm [resolvable:$true] %s285
          %s287 = sshll.u32 [#allocation10], 4
          %s288 = int_to_ptr.vmem [resolvable:$true] %s287
          %293 = dma.hbm_to_vmem [thread:$0]  %s286, 512, %s288, [#allocation9], 128, 128, 8
        $region32: #{tpu_custom_call.1} parent=11 // pred_fallthru
          _
        // Predicated region
        $region33: #{tpu_custom_call.1} parent=11 // pred_check
          %p294 = pneg %p175
        $region34: #{tpu_custom_call.1} parent=11 // pred_check_branch
          %296 = sbr.rel (%p294) target = $region36
        $region35: #{tpu_custom_call.1} parent=11 // pred_region
          %298 = vsyncadd [#allocation12], 0
          %s299 = sshll.u32 %s6, 4
          %s300 = int_to_ptr.hbm [resolvable:$true] %s299
          %s301 = sshll.u32 [#allocation11], 4
          %s302 = int_to_ptr.vmem [resolvable:$true] %s301
          %307 = dma.hbm_to_vmem [thread:$0]  %s300, 512, %s302, [#allocation12], 128, 128, 8
        $region36: #{tpu_custom_call.1} parent=11 // pred_fallthru
          _
        // Predicated region
        $region37: #{tpu_custom_call.1} parent=11 // pred_check
          %p308 = pneg %p196
        $region38: #{tpu_custom_call.1} parent=11 // pred_check_branch
          %310 = sbr.rel (%p308) target = $region40
        $region39: #{tpu_custom_call.1} parent=11 // pred_region
          _
        $region40: #{tpu_custom_call.1} parent=11 // pred_fallthru
          _
      $region12: #{tpu_custom_call.1} parent=5 // pred_fallthru
        _
      %p311 = scmp.lt.s32.totalorder %s23, 2
      // Predicated region
      $region41: #{tpu_custom_call.1} parent=5 // pred_check
        %p312 = pneg %p311
      $region42: #{tpu_custom_call.1} parent=5 // pred_check_branch
        %314 = sbr.rel (%p312) target = $region44
      $region43: #{tpu_custom_call.1} parent=5 // pred_region
        // Predicated region
        $region45: #{tpu_custom_call.1} parent=43 // pred_check
          %p315 = pneg %p43
        $region46: #{tpu_custom_call.1} parent=43 // pred_check_branch
          %317 = sbr.rel (%p315) target = $region48
        $region47: #{tpu_custom_call.1} parent=43 // pred_region
          %s318 = sand.u32 %s33, 1
          %s319 = scalar_lea.sflag [#allocation3], %s318
          %s320 = sand.u32 %s33, 1
          %s321 = smul.addr %s320, 8
          %s322 = scalar_lea.vmem [#allocation2], %s321
          %324 = vsyncadd %s319, 0
          %s325 = smul.addr %s23, 8
          %s326 = scalar_lea.hbm %s0, %s325
          %s328 = sshll.u32 %s326, 4
          %s329 = int_to_ptr.hbm [resolvable:$true] %s328
          %s330 = sshll.u32 %s322, 4
          %s331 = int_to_ptr.vmem [resolvable:$true] %s330
          %333 = dma.hbm_to_vmem [thread:$0]  %s329, 128, %s331, %s319
        $region48: #{tpu_custom_call.1} parent=43 // pred_fallthru
          _
      $region44: #{tpu_custom_call.1} parent=5 // pred_fallthru
        _
      %p334 = scmp.le.s32.totalorder 1, %s23
      %p335 = scmp.lt.s32.totalorder %s23, 3
      %p336 = pnand %p334, %p335
      %p337 = pneg %p336
      // Predicated region
      $region49: #{tpu_custom_call.1} parent=5 // pred_check
        _
      $region50: #{tpu_custom_call.1} parent=5 // pred_check_branch
        %339 = sbr.rel (%p336) target = $region52
      $region51: #{tpu_custom_call.1} parent=5 // pred_region
        %s340 = ssub.s32 %s23, 1
        %s341 = sand.u32 %s36, 1
        %s342 = scalar_lea.sflag [#allocation3], %s341
        %s343 = sand.u32 %s36, 1
        %s344 = smul.addr %s343, 8
        %s345 = scalar_lea.vmem [#allocation2], %s344
        // Predicated region
        $region53: #{tpu_custom_call.1} parent=51 // pred_check
          %p346 = pneg %p49
        $region54: #{tpu_custom_call.1} parent=51 // pred_check_branch
          %348 = sbr.rel (%p346) target = $region56
        $region55: #{tpu_custom_call.1} parent=51 // pred_region
          %350 = dma.done %s342, 128
        $region56: #{tpu_custom_call.1} parent=51 // pred_fallthru
          _
        // Predicated region
        $region57: #{tpu_custom_call.1} parent=51 // pred_check
          %p351 = pneg %p70
        $region58: #{tpu_custom_call.1} parent=51 // pred_check_branch
          %353 = sbr.rel (%p351) target = $region60
        $region59: #{tpu_custom_call.1} parent=51 // pred_region
          %355 = dma.done [#allocation6], 16
        $region60: #{tpu_custom_call.1} parent=51 // pred_fallthru
          _
        // Predicated region
        $region61: #{tpu_custom_call.1} parent=51 // pred_check
          %p356 = pneg %p112
        $region62: #{tpu_custom_call.1} parent=51 // pred_check_branch
          %358 = sbr.rel (%p356) target = $region64
        $region63: #{tpu_custom_call.1} parent=51 // pred_region
          %360 = dma.done [#allocation6], 512
        $region64: #{tpu_custom_call.1} parent=51 // pred_fallthru
          _
        // Predicated region
        $region65: #{tpu_custom_call.1} parent=51 // pred_check
          %p361 = pneg %p133
        $region66: #{tpu_custom_call.1} parent=51 // pred_check_branch
          %363 = sbr.rel (%p361) target = $region68
        $region67: #{tpu_custom_call.1} parent=51 // pred_region
          %365 = dma.done [#allocation9], 512
        $region68: #{tpu_custom_call.1} parent=51 // pred_fallthru
          _
        // Predicated region
        $region69: #{tpu_custom_call.1} parent=51 // pred_check
          %p366 = pneg %p154
        $region70: #{tpu_custom_call.1} parent=51 // pred_check_branch
          %368 = sbr.rel (%p366) target = $region72
        $region71: #{tpu_custom_call.1} parent=51 // pred_region
          %370 = dma.done [#allocation9], 512
        $region72: #{tpu_custom_call.1} parent=51 // pred_fallthru
          _
        // Predicated region
        $region73: #{tpu_custom_call.1} parent=51 // pred_check
          %p371 = pneg %p175
        $region74: #{tpu_custom_call.1} parent=51 // pred_check_branch
          %373 = sbr.rel (%p371) target = $region76
        $region75: #{tpu_custom_call.1} parent=51 // pred_region
          %375 = dma.done [#allocation12], 512
        $region76: #{tpu_custom_call.1} parent=51 // pred_fallthru
          _
        %s376 = sand.u32 %s36, 1
        %s377 = scalar_lea.sflag [#allocation3], %s376
        %s378 = sand.u32 %s36, 1
        %s379 = smul.addr %s378, 8
        %s380 = scalar_lea.vmem [#allocation2], %s379
        %p381 = pneg %p49
        %p382 = pneg %p46
        %p383 = pneg %p70
        %p384 = pneg %p67
        %p385 = pneg %p91
        %p386 = pneg %p88
        %p387 = pneg %p112
        %p388 = pneg %p109
        %p389 = pneg %p133
        %p390 = pneg %p130
        %p391 = pneg %p154
        %p392 = pneg %p151
        %p393 = pneg %p175
        %p394 = pneg %p172
        %p395 = pneg %p196
        %p396 = pneg %p193
        %p397 = pneg %p222
        %p398 = pneg %p219
        %s399 = sand.u32 %s209, 1
        %s400 = scalar_lea.sflag [#allocation4], %s399
        %s401 = sand.u32 %s209, 1
        %s402 = smul.addr %s401, 8
        %s403 = scalar_lea.vmem [#allocation13], %s402
        %v404 = vld [vmem:[%s345] sm:$0xff]
        %vm405 = vcmask 261120
        %v406 = vsel %vm405, %v404, 0.0
        %407 = vadd.xlane.f32.xlu0 %v406
        %v408 = vpop.xlane.xlu0 %407
        %v409 = vrcp.pop 32.0
        %v410 = vmul.f32 32.0, %v409
        %v411 = vsub.f32 1.0, %v410
        %v412 = vmul.f32 %v409, %v411
        %v413 = vadd.f32 %v409, %v412
        %vm414 = vweird.f32 %v409
        %v415 = vsel %vm414, %v409, %v413
        %v416 = vmul.f32 %v408, %v415
        %v417 = vsub.f32 %v404, %v416
        %v418 = vmul.f32 %v417, %v417
        %v419 = vsel %vm405, %v418, 0.0
        %420 = vadd.xlane.f32.xlu0 %v419
        %v421 = vpop.xlane.xlu0 %420
        %v422 = vmul.f32 %v421, %v415
        %v423 = vadd.f32 %v422, 1e-05
        %v424 = vrsqrt.pop %v423
        %v425 = vmul.f32 %v424, %v423
        %v426 = vmul.f32 %v425, %v424
        %v427 = vmul.f32 0.5, %v426
        %v428 = vsub.f32 1.5, %v427
        %v429 = vmul.f32 %v424, %v428
        %vm430 = vweird.f32 %v423
        %vm431 = vweird.f32 %v424
        %vm432 = vmor %vm430, %vm431
        %v433 = vsel %vm432, %v424, %v429
        %v434 = vmul.f32 %v417, %v433
        %v435 = vld [vmem:[#allocation5] sm:$0x1]
        %v437 = vperm.slane %v435, 0
        %v439 = vmul.f32 %v434, %v437
        %v440 = vld [vmem:[%s2] sm:$0x1]
        %v442 = vperm.slane %v440, 0
        %v444 = vadd.f32 %v439, %v442
        %v445 = vld [vmem:[#allocation7] sm:$0xff]
        %v446 = vld [vmem:[#allocation7 + $0x8] sm:$0xff]
        %v447 = vld [vmem:[#allocation7 + $0x10] sm:$0xff]
        %v448 = vld [vmem:[#allocation7 + $0x18] sm:$0xff]
        %v450 = vsel %vm405, %v444, 0
        %452 = vmatpush.msra.mxu0 0.0
        %453 = vmatpush.msra.mxu0 0.0
        %454 = vmatpush.msra.mxu0 0.0
        %455 = vmatpush.msra.mxu0 0.0
        %456 = vmatpush.msra.mxu0 0.0
        %457 = vmatpush.msra.mxu0 0.0
        %458 = vmatpush.msra.mxu0 0.0
        %459 = vmatpush.msra.mxu0 0.0
        %460 = vmatpush.msra.mxu0 0.0
        %461 = vmatpush.msra.mxu0 0.0
        %462 = vmatpush.msra.mxu0 0.0
        %463 = vmatpush.msra.mxu0 0.0
        %464 = vmatpush.msra.mxu0 %v448
        %465 = vmatpush.msra.mxu0 %v447
        %466 = vmatpush.msra.mxu0 %v446
        %467 = vmatpush.msra.mxu0 %v445
        %468 = vmatmul.f32.gmra.mxu0 %v450
        %v469 = vpop.f32.mrf.mxu0
        %v470 = vadd.f32 0.0, %v469
        %471 = vdwg.mxu0
        %v472 = vld [vmem:[#allocation8] sm:$0xff]
        %v473 = vld [vmem:[#allocation8 + $0x8] sm:$0xff]
        %v474 = vld [vmem:[#allocation8 + $0x10] sm:$0xff]
        %v475 = vld [vmem:[#allocation8 + $0x18] sm:$0xff]
        %476 = vmatpush.msra.mxu0 0.0
        %477 = vmatpush.msra.mxu0 0.0
        %478 = vmatpush.msra.mxu0 0.0
        %479 = vmatpush.msra.mxu0 0.0
        %480 = vmatpush.msra.mxu0 0.0
        %481 = vmatpush.msra.mxu0 0.0
        %482 = vmatpush.msra.mxu0 0.0
        %483 = vmatpush.msra.mxu0 0.0
        %484 = vmatpush.msra.mxu0 0.0
        %485 = vmatpush.msra.mxu0 0.0
        %486 = vmatpush.msra.mxu0 0.0
        %487 = vmatpush.msra.mxu0 0.0
        %488 = vmatpush.msra.mxu0 %v475
        %489 = vmatpush.msra.mxu0 %v474
        %490 = vmatpush.msra.mxu0 %v473
        %491 = vmatpush.msra.mxu0 %v472
        %492 = vmatmul.f32.gmra.mxu0 %v450
        %v493 = vpop.f32.mrf.mxu0
        %v494 = vadd.f32 0.0, %v493
        %495 = vdwg.mxu0
        %v496 = vld [vmem:[#allocation10] sm:$0xff]
        %v497 = vld [vmem:[#allocation10 + $0x8] sm:$0xff]
        %v498 = vld [vmem:[#allocation10 + $0x10] sm:$0xff]
        %v499 = vld [vmem:[#allocation10 + $0x18] sm:$0xff]
        %500 = vmatpush.msra.mxu0 0.0
        %501 = vmatpush.msra.mxu0 0.0
        %502 = vmatpush.msra.mxu0 0.0
        %503 = vmatpush.msra.mxu0 0.0
        %504 = vmatpush.msra.mxu0 0.0
        %505 = vmatpush.msra.mxu0 0.0
        %506 = vmatpush.msra.mxu0 0.0
        %507 = vmatpush.msra.mxu0 0.0
        %508 = vmatpush.msra.mxu0 0.0
        %509 = vmatpush.msra.mxu0 0.0
        %510 = vmatpush.msra.mxu0 0.0
        %511 = vmatpush.msra.mxu0 0.0
        %512 = vmatpush.msra.mxu0 %v499
        %513 = vmatpush.msra.mxu0 %v498
        %514 = vmatpush.msra.mxu0 %v497
        %515 = vmatpush.msra.mxu0 %v496
        %516 = vmatmul.f32.gmra.mxu0 %v450
        %v517 = vpop.f32.mrf.mxu0
        %v518 = vadd.f32 0.0, %v517
        %519 = vdwg.mxu0
        %v520 = vlaneseq
        %v521 = vshrl.u32 %v520, 7
        %v522 = vlaneseq
        %v523 = vand.u32 %v522, 127
        %vm524 = vcmp.le.s32.totalorder %v523, %v521
        %v525 = vld [vmem:[#allocation11] sm:$0xff]
        %v526 = vld [vmem:[#allocation11 + $0x8] sm:$0xff]
        %v527 = vld [vmem:[#allocation11 + $0x10] sm:$0xff]
        %v528 = vld [vmem:[#allocation11 + $0x18] sm:$0xff]
        %v529 = vld [vmem:[%s7] sm:$0x1]
        %v531 = vperm.slane %v529, 0
        %vm533 = vcmask 130048
        %v535 = vsel %vm533, %v470, 0
        %v538 = vsel %vm533, %v494, 0
        %540 = vmatpush.xpose.msra.mxu0 0.0
        %541 = vmatpush.xpose.msra.mxu0 0.0
        %542 = vmatpush.xpose.msra.mxu0 0.0
        %543 = vmatpush.xpose.msra.mxu0 0.0
        %544 = vmatpush.xpose.msra.mxu0 0.0
        %545 = vmatpush.xpose.msra.mxu0 0.0
        %546 = vmatpush.xpose.msra.mxu0 0.0
        %547 = vmatpush.xpose.msra.mxu0 0.0
        %548 = vmatpush.xpose.msra.mxu0 0.0
        %549 = vmatpush.xpose.msra.mxu0 0.0
        %550 = vmatpush.xpose.msra.mxu0 0.0
        %551 = vmatpush.xpose.msra.mxu0 0.0
        %552 = vmatpush.xpose.msra.mxu0 0.0
        %553 = vmatpush.xpose.msra.mxu0 0.0
        %554 = vmatpush.xpose.msra.mxu0 0.0
        %555 = vmatpush.xpose.msra.mxu0 %v538
        %556 = vmatmul.f32.gmra.mxu0 %v535
        %v557 = vpop.f32.mrf.mxu0
        %v558 = vadd.f32 0.0, %v557
        %559 = vdwg.mxu0
        %v560 = vmul.f32 %v558, 0.25
        %v561 = vsel %vm524, %v560, -inf
        %vm562 = vcmask 64512
        %v563 = vsel %vm562, %v561, -inf
        %564 = vmax.xlane.f32.xlu0 %v563
        %v565 = vpop.xlane.xlu0 %564
        %v566 = vsub.f32 %v561, %v565
        %v567 = vmul.f32 %v566, 1.442695
        %v568 = vpow.pop %v567
        %v569 = vsel %vm562, %v568, 0.0
        %570 = vadd.xlane.f32.xlu0 %v569
        %v571 = vpop.xlane.xlu0 %570
        %v572 = vrcp.pop %v571
        %v573 = vmul.f32 %v571, %v572
        %v574 = vsub.f32 1.0, %v573
        %v575 = vmul.f32 %v572, %v574
        %v576 = vadd.f32 %v572, %v575
        %vm577 = vweird.f32 %v571
        %vm578 = vweird.f32 %v572
        %vm579 = vmor %vm577, %vm578
        %v580 = vsel %vm579, %v572, %v576
        %v581 = vand.u32 2147483647, %v571
        %vm582 = vcmp.eq.f32.partialorder %v581, 8.507059e+37
        %v583 = vand.u32 %v571, 2147483648
        %v584 = vor.u32 1.1754944e-38, %v583
        %v585 = vsel %vm582, %v584, %v580
        %v586 = vmul.f32 %v568, %v585
        %v588 = vsel %vm562, %v586, 0
        %590 = vmatpush.msra.mxu0 0.0
        %591 = vmatpush.msra.mxu0 0.0
        %592 = vmatpush.msra.mxu0 0.0
        %593 = vmatpush.msra.mxu0 0.0
        %594 = vmatpush.msra.mxu0 0.0
        %595 = vmatpush.msra.mxu0 0.0
        %596 = vmatpush.msra.mxu0 0.0
        %597 = vmatpush.msra.mxu0 0.0
        %598 = vmatpush.msra.mxu0 0.0
        %599 = vmatpush.msra.mxu0 0.0
        %600 = vmatpush.msra.mxu0 0.0
        %601 = vmatpush.msra.mxu0 0.0
        %602 = vmatpush.msra.mxu0 0.0
        %603 = vmatpush.msra.mxu0 0.0
        %604 = vmatpush.msra.mxu0 0.0
        %605 = vmatpush.msra.mxu0 %v518
        %606 = vmatmul.f32.gmra.mxu0 %v588
        %v607 = vpop.f32.mrf.mxu0
        %v608 = vadd.f32 0.0, %v607
        %609 = vdwg.mxu0
        %v611 = vsel %vm533, %v608, 0
        %613 = vmatpush.msra.mxu0 0.0
        %614 = vmatpush.msra.mxu0 0.0
        %615 = vmatpush.msra.mxu0 0.0
        %616 = vmatpush.msra.mxu0 0.0
        %617 = vmatpush.msra.mxu0 0.0
        %618 = vmatpush.msra.mxu0 0.0
        %619 = vmatpush.msra.mxu0 0.0
        %620 = vmatpush.msra.mxu0 0.0
        %621 = vmatpush.msra.mxu0 0.0
        %622 = vmatpush.msra.mxu0 0.0
        %623 = vmatpush.msra.mxu0 0.0
        %624 = vmatpush.msra.mxu0 0.0
        %625 = vmatpush.msra.mxu0 0.0
        %626 = vmatpush.msra.mxu0 0.0
        %627 = vmatpush.msra.mxu0 %v526
        %628 = vmatpush.msra.mxu0 %v525
        %629 = vmatmul.f32.gmra.mxu0 %v611
        %v630 = vpop.f32.mrf.mxu0
        %v631 = vadd.f32 0.0, %v630
        %632 = vdwg.mxu0
        %v633 = vadd.f32 %v531, %v631
        %634 = vrot.lane.b32.xlu0 %v470, 112
        %v635 = vpop.permute.xlu0 %634
        %636 = vrot.lane.b32.xlu0 %v494, 112
        %v637 = vpop.permute.xlu0 %636
        %v638 = vsel %vm533, %v635, 0
        %v640 = vsel %vm533, %v637, 0
        %642 = vmatpush.xpose.msra.mxu0 0.0
        %643 = vmatpush.xpose.msra.mxu0 0.0
        %644 = vmatpush.xpose.msra.mxu0 0.0
        %645 = vmatpush.xpose.msra.mxu0 0.0
        %646 = vmatpush.xpose.msra.mxu0 0.0
        %647 = vmatpush.xpose.msra.mxu0 0.0
        %648 = vmatpush.xpose.msra.mxu0 0.0
        %649 = vmatpush.xpose.msra.mxu0 0.0
        %650 = vmatpush.xpose.msra.mxu0 0.0
        %651 = vmatpush.xpose.msra.mxu0 0.0
        %652 = vmatpush.xpose.msra.mxu0 0.0
        %653 = vmatpush.xpose.msra.mxu0 0.0
        %654 = vmatpush.xpose.msra.mxu0 0.0
        %655 = vmatpush.xpose.msra.mxu0 0.0
        %656 = vmatpush.xpose.msra.mxu0 0.0
        %657 = vmatpush.xpose.msra.mxu0 %v640
        %658 = vmatmul.f32.gmra.mxu0 %v638
        %v659 = vpop.f32.mrf.mxu0
        %v660 = vadd.f32 0.0, %v659
        %661 = vdwg.mxu0
        %v662 = vmul.f32 %v660, 0.25
        %v663 = vsel %vm524, %v662, -inf
        %v664 = vsel %vm562, %v663, -inf
        %665 = vmax.xlane.f32.xlu0 %v664
        %v666 = vpop.xlane.xlu0 %665
        %v667 = vsub.f32 %v663, %v666
        %v668 = vmul.f32 %v667, 1.442695
        %v669 = vpow.pop %v668
        %v670 = vsel %vm562, %v669, 0.0
        %671 = vadd.xlane.f32.xlu0 %v670
        %v672 = vpop.xlane.xlu0 %671
        %v673 = vrcp.pop %v672
        %v674 = vmul.f32 %v672, %v673
        %v675 = vsub.f32 1.0, %v674
        %v676 = vmul.f32 %v673, %v675
        %v677 = vadd.f32 %v673, %v676
        %vm678 = vweird.f32 %v672
        %vm679 = vweird.f32 %v673
        %vm680 = vmor %vm678, %vm679
        %v681 = vsel %vm680, %v673, %v677
        %v682 = vand.u32 2147483647, %v672
        %vm683 = vcmp.eq.f32.partialorder %v682, 8.507059e+37
        %v684 = vand.u32 %v672, 2147483648
        %v685 = vor.u32 1.1754944e-38, %v684
        %v686 = vsel %vm683, %v685, %v681
        %v687 = vmul.f32 %v669, %v686
        %689 = vrot.lane.b32.xlu0 %v518, 112
        %v690 = vpop.permute.xlu0 %689
        %v693 = vsel %vm562, %v687, 0
        %695 = vmatpush.msra.mxu0 0.0
        %696 = vmatpush.msra.mxu0 0.0
        %697 = vmatpush.msra.mxu0 0.0
        %698 = vmatpush.msra.mxu0 0.0
        %699 = vmatpush.msra.mxu0 0.0
        %700 = vmatpush.msra.mxu0 0.0
        %701 = vmatpush.msra.mxu0 0.0
        %702 = vmatpush.msra.mxu0 0.0
        %703 = vmatpush.msra.mxu0 0.0
        %704 = vmatpush.msra.mxu0 0.0
        %705 = vmatpush.msra.mxu0 0.0
        %706 = vmatpush.msra.mxu0 0.0
        %707 = vmatpush.msra.mxu0 0.0
        %708 = vmatpush.msra.mxu0 0.0
        %709 = vmatpush.msra.mxu0 0.0
        %710 = vmatpush.msra.mxu0 %v690
        %711 = vmatmul.f32.gmra.mxu0 %v693
        %v712 = vpop.f32.mrf.mxu0
        %v713 = vadd.f32 0.0, %v712
        %714 = vdwg.mxu0
        %v716 = vsel %vm533, %v713, 0
        %718 = vmatpush.msra.mxu0 0.0
        %719 = vmatpush.msra.mxu0 0.0
        %720 = vmatpush.msra.mxu0 0.0
        %721 = vmatpush.msra.mxu0 0.0
        %722 = vmatpush.msra.mxu0 0.0
        %723 = vmatpush.msra.mxu0 0.0
        %724 = vmatpush.msra.mxu0 0.0
        %725 = vmatpush.msra.mxu0 0.0
        %726 = vmatpush.msra.mxu0 0.0
        %727 = vmatpush.msra.mxu0 0.0
        %728 = vmatpush.msra.mxu0 0.0
        %729 = vmatpush.msra.mxu0 0.0
        %730 = vmatpush.msra.mxu0 0.0
        %731 = vmatpush.msra.mxu0 0.0
        %732 = vmatpush.msra.mxu0 %v528
        %733 = vmatpush.msra.mxu0 %v527
        %734 = vmatmul.f32.gmra.mxu0 %v716
        %v735 = vpop.f32.mrf.mxu0
        %v736 = vadd.f32 0.0, %v735
        %737 = vdwg.mxu0
        %v738 = vadd.f32 %v633, %v736
        %v739 = vadd.f32 %v738, %v404
        %740 = vst.msk [vmem:[%s403] sm:$0xff] %vm405, %v739
        %s741 = sand.u32 %s209, 1
        %s742 = scalar_lea.sflag [#allocation4], %s741
        %s743 = sand.u32 %s209, 1
        %s744 = smul.addr %s743, 8
        %s745 = scalar_lea.vmem [#allocation13], %s744
        // Predicated region
        $region77: #{tpu_custom_call.1} parent=51 // pred_check
          %p746 = pneg %p219
        $region78: #{tpu_custom_call.1} parent=51 // pred_check_branch
          %748 = sbr.rel (%p746) target = $region80
        $region79: #{tpu_custom_call.1} parent=51 // pred_region
          %750 = vsyncadd %s742, 0
          %s751 = smul.addr %s28, 8
          %s752 = scalar_lea.hbm %s8, %s751
          %s754 = sshll.u32 %s745, 4
          %s755 = int_to_ptr.vmem [resolvable:$true] %s754
          %s756 = sshll.u32 %s752, 4
          %s757 = int_to_ptr.hbm [resolvable:$true] %s756
          %759 = dma.vmem_to_hbm [thread:$0]  %s755, 128, %s757, %s742
        $region80: #{tpu_custom_call.1} parent=51 // pred_fallthru
          _
      $region52: #{tpu_custom_call.1} parent=5 // pred_fallthru
        _
      %p760 = scmp.le.s32.totalorder 2, %s23
      // Predicated region
      $region81: #{tpu_custom_call.1} parent=5 // pred_check
        %p761 = pneg %p760
      $region82: #{tpu_custom_call.1} parent=5 // pred_check_branch
        %763 = sbr.rel (%p761) target = $region84
      $region83: #{tpu_custom_call.1} parent=5 // pred_region
        %s764 = ssub.s32 %s23, 2
        // Predicated region
        $region85: #{tpu_custom_call.1} parent=83 // pred_check
          %p765 = pneg %p225
        $region86: #{tpu_custom_call.1} parent=83 // pred_check_branch
          %767 = sbr.rel (%p765) target = $region88
        $region87: #{tpu_custom_call.1} parent=83 // pred_region
          %s768 = sand.u32 %s210, 1
          %s769 = scalar_lea.sflag [#allocation4], %s768
          %s770 = sand.u32 %s210, 1
          %s771 = smul.addr %s770, 8
          %s772 = scalar_lea.vmem [#allocation13], %s771
          %774 = dma.done %s769, 128
        $region88: #{tpu_custom_call.1} parent=83 // pred_fallthru
          _
      $region84: #{tpu_custom_call.1} parent=5 // pred_fallthru
        _
    $region6: #{tpu_custom_call.1} parent=1 // loop_footer
      %s27 = sadd.s32 1, %s23
    $region7: #{tpu_custom_call.1} parent=1 // loop_footer_branch
      %22 = sbr.rel target = $region3
    $region8: #{tpu_custom_call.1} parent=1 // loop_exit
      _
    %775 = vsyncpa [#allocation3], 1
    %s776 = scalar_lea.sflag [#allocation3], 1
    %777 = vsyncpa %s776, 1
    %778 = vsyncpa [#allocation6], 1
    %779 = vsyncpa [#allocation9], 1
    %780 = vsyncpa [#allocation12], 1
    %781 = vsyncpa [#allocation4], 1
    %s782 = scalar_lea.sflag [#allocation4], 1
    %783 = vsyncpa %s782, 1

</llo_original>
